<compile_context>
chip_gen: v7x
topology: tpu7x:2x2x1
jax: 0.10.0
libtpu: 0.0.40
codegen_flags: <defaults>
</compile_context>

<pallas_src>
import jax
import jax.numpy as jnp
from jax import lax
from jax.experimental import pallas as pl
from jax.experimental.pallas import tpu as pltpu


def _round_up(x, m):
    return (x + m - 1) // m * m


def _matmul_bias_relu_kernel(x_ref, w_ref, b_ref, o_ref):
    """Fused (TM,Kp)bf16 @ (Kp,Np)bf16 -> f32 acc, + bias(1,Np), ReLU."""
    acc = jnp.dot(x_ref[...], w_ref[...], preferred_element_type=jnp.float32)
    o_ref[...] = jnp.maximum(acc + b_ref[...], 0.0).astype(o_ref.dtype)


def _matmul_bias_relu(patches, w_flat, bias):
    """patches: (M, K) f32, w_flat: (K, N) f32, bias: (N,) f32 -> (M, N) f32.

    Pads K to a sublane multiple, N to a 128-lane multiple (lane-dense stores),
    M to a tile multiple, casts matmul inputs to bf16 (f32 accumulation), and
    runs a parallel 1-D grid over M tiles.  The padded weight and bias tiles
    stay VMEM-resident across the whole grid; only the patch stream is piped.
    """
    M, K = patches.shape
    _, N = w_flat.shape

    Kp = _round_up(K, 8)            # sublane-aligned contraction dim
    Np = _round_up(N, 128)          # lane-dense output -> unmasked vst
    tile_m = 512 if M > 512 else 128
    Mp = _round_up(M, tile_m)
    grid_m = Mp // tile_m

    x = jnp.pad(patches, ((0, Mp - M), (0, Kp - K))).astype(jnp.bfloat16)
    w = jnp.pad(w_flat, ((0, Kp - K), (0, Np - N))).astype(jnp.bfloat16)
    b = jnp.pad(bias, ((0, Np - N),)).reshape(1, Np).astype(jnp.float32)

    cost = pl.CostEstimate(
        flops=2 * Mp * Kp * Np,
        transcendentals=0,
        bytes_accessed=Mp * Kp * 2 + Kp * Np * 2 + Np * 4 + Mp * Np * 4,
    )

    out = pl.pallas_call(
        _matmul_bias_relu_kernel,
        out_shape=jax.ShapeDtypeStruct((Mp, Np), jnp.float32),
        grid_spec=pltpu.PrefetchScalarGridSpec(
            num_scalar_prefetch=0,
            grid=(grid_m,),
            in_specs=[
                pl.BlockSpec((tile_m, Kp), lambda i: (i, 0)),   # streamed patches
                pl.BlockSpec((Kp, Np), lambda i: (0, 0)),       # resident weight
                pl.BlockSpec((1, Np), lambda i: (0, 0)),        # resident bias
            ],
            out_specs=pl.BlockSpec((tile_m, Np), lambda i: (i, 0)),
        ),
        compiler_params=pltpu.CompilerParams(
            # M tiles are independent -> megacore sharding on v7x.
            dimension_semantics=("parallel",),
            # Footprint (double-buffered) is well under 32 MiB for any tile
            # chosen above, so this fits v5e/v6e/v7x scoped VMEM budgets.
            vmem_limit_bytes=32 * 1024 * 1024,
        ),
        cost_estimate=cost,
    )(x, w, b)
    return out[:M, :N]


def _extract_patches_nhwc(x_nhwc, k):
    """(N,H,W,C) -> (N*Ho*Wo, C*k*k), feature order (C, kh, kw) = PyTorch order."""
    n, h, w, c = x_nhwc.shape
    ho, wo = h - k + 1, w - k + 1
    patches = lax.conv_general_dilated_patches(
        x_nhwc,
        filter_shape=(k, k),
        window_strides=(1, 1),
        padding="VALID",
        dimension_numbers=("NHWC", "HWIO", "NHWC"),
    )  # (N, Ho, Wo, C*k*k), channel-major feature ordering
    return patches.reshape(n * ho * wo, c * k * k), (n, ho, wo)


def conv2d_relu_nhwc(x_nhwc, weight, bias):
    """Conv2d(stride=1, pad=0) + ReLU in NHWC. weight: (Cout, Cin, k, k)."""
    cout, cin, k, _ = weight.shape
    patches, (n, ho, wo) = _extract_patches_nhwc(x_nhwc, k)
    w_flat = weight.reshape(cout, cin * k * k).T        # (K, Cout), (C,kh,kw) order
    out = _matmul_bias_relu(patches, w_flat, bias)      # (M, Cout) f32
    return out.reshape(n, ho, wo, cout)                 # stays NHWC


def sequential_forward(x_nchw, params):
    """Equivalent of Sequential(Conv2d(1,20,5), ReLU(), Conv2d(20,64,5), ReLU())."""
    (w1, b1), (w2, b2) = params
    x = jnp.transpose(x_nchw, (0, 2, 3, 1))             # single NCHW->NHWC at boundary
    x = conv2d_relu_nhwc(x, w1, b1)
    x = conv2d_relu_nhwc(x, w2, b2)                     # NHWC kept between stages
    return jnp.transpose(x, (0, 3, 1, 2))               # single NHWC->NCHW at boundary


def init_params(key):
    k1, k2, k3, k4 = jax.random.split(key, 4)
    w1 = jax.random.normal(k1, (20, 1, 5, 5), jnp.float32) * 0.1
    b1 = jax.random.normal(k2, (20,), jnp.float32) * 0.1
    w2 = jax.random.normal(k3, (64, 20, 5, 5), jnp.float32) * 0.05
    b2 = jax.random.normal(k4, (64,), jnp.float32) * 0.05
    return ((w1, b1), (w2, b2))


def _reference(x_nchw, params):
    """Pure-XLA f32 reference (torch.nn.Conv2d semantics) for sanity checking."""
    def conv_relu(x, w, b):
        y = lax.conv_general_dilated(
            x, w, window_strides=(1, 1), padding="VALID",
            dimension_numbers=("NCHW", "OIHW", "NCHW"),
            precision=lax.Precision.HIGHEST)
        return jnp.maximum(y + b[None, :, None, None], 0.0)
    (w1, b1), (w2, b2) = params
    return conv_relu(conv_relu(x_nchw, w1, b1), w2, b2)


if __name__ == "__main__":
    key = jax.random.PRNGKey(0)
    pkey, xkey = jax.random.split(key)
    params = init_params(pkey)

    # NCHW input, matching the example Sequential's Conv2d(1, 20, 5) first stage.
    x = jax.random.normal(xkey, (2, 1, 16, 16), jnp.float32)

    fwd = jax.jit(sequential_forward)
    out = jax.block_until_ready(fwd(x, params))

    # Conv2d(1,20,5) on 16x16 -> 12x12, then Conv2d(20,64,5) -> 8x8.
    assert out.shape == (2, 64, 8, 8), out.shape
    assert bool(jnp.all(out >= 0.0))  # ReLU output is non-negative

    # Loose tolerance: kernel uses bf16 matmul inputs with f32 accumulation.
    ref = _reference(x, params)
    max_err = float(jnp.max(jnp.abs(out - ref)))
    assert bool(jnp.allclose(out, ref, rtol=2e-2, atol=2e-2)), max_err

    print("KERNEL_OK")
</pallas_src>

<mosaic_0001>
module attributes {stable_mosaic.version = 11 : i64} {
  func.func @_matmul_bias_relu_kernel(%arg0: i32, %arg1: memref<128x32xbf16, #tpu.memory_space<vmem>>, %arg2: memref<32x128xbf16, #tpu.memory_space<vmem>>, %arg3: memref<1x128xf32, #tpu.memory_space<vmem>>, %arg4: memref<128x128xf32, #tpu.memory_space<vmem>>) attributes {dimension_semantics = [#tpu.dimension_semantics<parallel>], iteration_bounds = array<i64: 3>, scalar_prefetch = 0 : i64, scratch_operands = 0 : i64, tpu.core_type = #tpu.core_type<tc>, window_params = [{transform_indices = @transform_0, window_bounds = array<i64: 128, 32>}, {pipeline_mode = #tpu.pipeline_mode<synchronous>, transform_indices = @transform_1, window_bounds = array<i64: 32, 128>}, {pipeline_mode = #tpu.pipeline_mode<synchronous>, transform_indices = @transform_2, window_bounds = array<i64: 1, 128>}, {transform_indices = @transform_3, window_bounds = array<i64: 128, 128>}]} {
    %c0 = arith.constant 0 : index
    %c0_0 = arith.constant 0 : index
    %0 = vector.load %arg1[%c0, %c0_0] : memref<128x32xbf16, #tpu.memory_space<vmem>>, vector<128x32xbf16>
    %c0_1 = arith.constant 0 : index
    %c0_2 = arith.constant 0 : index
    %1 = vector.load %arg2[%c0_1, %c0_2] : memref<32x128xbf16, #tpu.memory_space<vmem>>, vector<32x128xbf16>
    %cst = arith.constant dense<0.000000e+00> : vector<128x128xf32>
    %2 = tpu.matmul %0, %1, %cst {dimension_numbers = #tpu.dot_dimension_numbers<[1], [0], [0], [1], [0, 0, 1, 1], [], []>} : vector<128x32xbf16>, vector<32x128xbf16>, vector<128x128xf32> -> vector<128x128xf32>
    %c0_3 = arith.constant 0 : index
    %c0_4 = arith.constant 0 : index
    %3 = vector.load %arg3[%c0_3, %c0_4] : memref<1x128xf32, #tpu.memory_space<vmem>>, vector<1x128xf32>
    %4 = vector.broadcast %3 : vector<1x128xf32> to vector<128x128xf32>
    %5 = arith.addf %2, %4 : vector<128x128xf32>
    %cst_5 = arith.constant 0.000000e+00 : f32
    %6 = vector.broadcast %cst_5 : f32 to vector<128x128xf32>
    %7 = arith.maximumf %5, %6 : vector<128x128xf32>
    %c0_6 = arith.constant 0 : index
    %c0_7 = arith.constant 0 : index
    %8 = vector.load %arg4[%c0_6, %c0_7] : memref<128x128xf32, #tpu.memory_space<vmem>>, vector<128x128xf32>
    tpu.vector_store %arg4[%c0_6, %c0_7], %7 {strides = array<i32>} : memref<128x128xf32, #tpu.memory_space<vmem>>, vector<128x128xf32>,
    return
  }
  func.func @transform_0(%arg0: i32) -> (i32, i32) {
    %c0_i32 = arith.constant 0 : i32
    %c0_i32_0 = arith.constant 0 : i32
    return %arg0, %c0_i32 : i32, i32
  }
  func.func @transform_1(%arg0: i32) -> (i32, i32) {
    %c0_i32 = arith.constant 0 : i32
    %c0_i32_0 = arith.constant 0 : i32
    %c0_i32_1 = arith.constant 0 : i32
    return %c0_i32, %c0_i32_0 : i32, i32
  }
  func.func @transform_2(%arg0: i32) -> (i32, i32) {
    %c0_i32 = arith.constant 0 : i32
    %c0_i32_0 = arith.constant 0 : i32
    %c0_i32_1 = arith.constant 0 : i32
    return %c0_i32, %c0_i32_0 : i32, i32
  }
  func.func @transform_3(%arg0: i32) -> (i32, i32) {
    %c0_i32 = arith.constant 0 : i32
    %c0_i32_0 = arith.constant 0 : i32
    return %arg0, %c0_i32 : i32, i32
  }
}

module attributes {stable_mosaic.version = 11 : i64} {
  func.func @_matmul_bias_relu_kernel(%arg0: i32, %arg1: memref<128x504xbf16, #tpu.memory_space<vmem>>, %arg2: memref<504x128xbf16, #tpu.memory_space<vmem>>, %arg3: memref<1x128xf32, #tpu.memory_space<vmem>>, %arg4: memref<128x128xf32, #tpu.memory_space<vmem>>) attributes {dimension_semantics = [#tpu.dimension_semantics<parallel>], iteration_bounds = array<i64: 1>, scalar_prefetch = 0 : i64, scratch_operands = 0 : i64, tpu.core_type = #tpu.core_type<tc>, window_params = [{transform_indices = @transform_0, window_bounds = array<i64: 128, 504>}, {pipeline_mode = #tpu.pipeline_mode<synchronous>, transform_indices = @transform_1, window_bounds = array<i64: 504, 128>}, {pipeline_mode = #tpu.pipeline_mode<synchronous>, transform_indices = @transform_2, window_bounds = array<i64: 1, 128>}, {transform_indices = @transform_3, window_bounds = array<i64: 128, 128>}]} {
    %c0 = arith.constant 0 : index
    %c0_0 = arith.constant 0 : index
    %0 = vector.load %arg1[%c0, %c0_0] : memref<128x504xbf16, #tpu.memory_space<vmem>>, vector<128x504xbf16>
    %c0_1 = arith.constant 0 : index
    %c0_2 = arith.constant 0 : index
    %1 = vector.load %arg2[%c0_1, %c0_2] : memref<504x128xbf16, #tpu.memory_space<vmem>>, vector<504x128xbf16>
    %cst = arith.constant dense<0.000000e+00> : vector<128x128xf32>
    %2 = tpu.matmul %0, %1, %cst {dimension_numbers = #tpu.dot_dimension_numbers<[1], [0], [0], [1], [0, 0, 1, 1], [], []>} : vector<128x504xbf16>, vector<504x128xbf16>, vector<128x128xf32> -> vector<128x128xf32>
    %c0_3 = arith.constant 0 : index
    %c0_4 = arith.constant 0 : index
    %3 = vector.load %arg3[%c0_3, %c0_4] : memref<1x128xf32, #tpu.memory_space<vmem>>, vector<1x128xf32>
    %4 = vector.broadcast %3 : vector<1x128xf32> to vector<128x128xf32>
    %5 = arith.addf %2, %4 : vector<128x128xf32>
    %cst_5 = arith.constant 0.000000e+00 : f32
    %6 = vector.broadcast %cst_5 : f32 to vector<128x128xf32>
    %7 = arith.maximumf %5, %6 : vector<128x128xf32>
    %c0_6 = arith.constant 0 : index
    %c0_7 = arith.constant 0 : index
    %8 = vector.load %arg4[%c0_6, %c0_7] : memref<128x128xf32, #tpu.memory_space<vmem>>, vector<128x128xf32>
    tpu.vector_store %arg4[%c0_6, %c0_7], %7 {strides = array<i32>} : memref<128x128xf32, #tpu.memory_space<vmem>>, vector<128x128xf32>,
    return
  }
  func.func @transform_0(%arg0: i32) -> (i32, i32) {
    %c0_i32 = arith.constant 0 : i32
    %c0_i32_0 = arith.constant 0 : i32
    return %arg0, %c0_i32 : i32, i32
  }
  func.func @transform_1(%arg0: i32) -> (i32, i32) {
    %c0_i32 = arith.constant 0 : i32
    %c0_i32_0 = arith.constant 0 : i32
    %c0_i32_1 = arith.constant 0 : i32
    return %c0_i32, %c0_i32_0 : i32, i32
  }
  func.func @transform_2(%arg0: i32) -> (i32, i32) {
    %c0_i32 = arith.constant 0 : i32
    %c0_i32_0 = arith.constant 0 : i32
    %c0_i32_1 = arith.constant 0 : i32
    return %c0_i32, %c0_i32_0 : i32, i32
  }
  func.func @transform_3(%arg0: i32) -> (i32, i32) {
    %c0_i32 = arith.constant 0 : i32
    %c0_i32_0 = arith.constant 0 : i32
    return %arg0, %c0_i32 : i32, i32
  }
}

</mosaic_0001>

<llo_original>
// kernel: sequential_forward.2
$region0: #{sequential_forward.2}
  #allocation0 [shape = 'u32[]', space=smem, size = 0x4, offset = 0x4, fixed_abs, tag = 'smem constant byte address 0x4 - core index']
  #allocation1 [shape = 'u32[144,128]{1,0:T(1,128)}', space=vmem, size = 0x12000, scoped, tag = 'internal scratch']
  %s0 = inlined_call_operand.vmem [shape: bf16[384,32], index: 0, kind: input, shape index: {}]
  %s1 = inlined_call_operand.vmem [shape: bf16[32,128], index: 1, kind: input, shape index: {}]
  %s2 = inlined_call_operand.vmem [shape: f32[1,128], index: 2, kind: input, shape index: {}]
  %s3 = inlined_call_operand.vmem [shape: f32[384,128], index: 3, kind: output, shape index: {}]
  %s4 = sld [smem:[#allocation0]]
  $region45: #{sequential_forward.2} parent=0
    _
  %s6 = ssub.s32 1, %s4
  %s7 = scalar_select 0, %s6, %s4
  loop: start=0, step=1, limit=5
  $region2: #{sequential_forward.2} parent=0 // loop_pre_header
    _
  $region3: #{sequential_forward.2} parent=0 // loop_header
    %s9 = sphi 0, %s13
    %p10 = scmp.ge.s32.totalorder %s9, 5
    %s19 = sphi 0, %s21
    %s22 = sphi 0, %s19
    %s23 = sphi 0, %s22
    %s39 = sphi 0, %s23
    %s43 = sphi 0, %s43
    %s45 = sphi 0, %s43
    %s46 = sphi 0, %s45
    %s60 = sphi 0, %s46
    %s64 = sphi 0, %s64
    %s66 = sphi 0, %s64
    %s67 = sphi 0, %s66
    %s81 = sphi 0, %s67
    %s87 = sphi 0, %s89
    %s90 = sphi 0, %s87
    %s91 = sphi 0, %s90
    %s107 = sphi 0, %s91
  $region4: #{sequential_forward.2} parent=0 // loop_header_branch
    %12 = sbr.rel (%p10) target = $region8
  $region5: #{sequential_forward.2} parent=0 // loop_body
    %s14 = ssub.s32 %s9, 1
    %s15 = ssub.s32 %s9, 2
    %s16 = sadd.s32 %s9, 1
    %s17 = ssub.s32 %s9, %s16
    %p18 = scmp.eq.s32.totalorder %s17, 0
    %s20 = sadd.s32 %s19, 1
    %s21 = scalar_select %p18, %s19, %s20
    %p24 = pneg %p18
    %p25 = scmp.eq.s32.totalorder %s9, 2
    %p26 = por %p24, %p25
    %p27 = scmp.ne.s32.totalorder %s19, %s22
    %p28 = scmp.eq.s32.totalorder %s9, 0
    %p29 = por %p27, %p28
    %p30 = scmp.ne.s32.totalorder %s19, %s22
    %p31 = scmp.eq.s32.totalorder %s14, 2
    %p32 = por %p30, %p31
    %p33 = scmp.ne.s32.totalorder %s22, %s23
    %p34 = scmp.eq.s32.totalorder %s14, 0
    %p35 = por %p33, %p34
    %p36 = scmp.ne.s32.totalorder %s22, %s23
    %p37 = scmp.eq.s32.totalorder %s15, 2
    %p38 = por %p36, %p37
    %p40 = scmp.ne.s32.totalorder %s23, %s39
    %p41 = scmp.eq.s32.totalorder %s15, 0
    %p42 = por %p40, %p41
    %s44 = sadd.s32 %s43, 1
    %p47 = scmp.eq.s32.totalorder %s9, 2
    %p48 = scmp.ne.s32.totalorder %s43, %s45
    %p49 = scmp.eq.s32.totalorder %s9, 0
    %p50 = por %p48, %p49
    %p51 = scmp.ne.s32.totalorder %s43, %s45
    %p52 = scmp.eq.s32.totalorder %s14, 2
    %p53 = por %p51, %p52
    %p54 = scmp.ne.s32.totalorder %s45, %s46
    %p55 = scmp.eq.s32.totalorder %s14, 0
    %p56 = por %p54, %p55
    %p57 = scmp.ne.s32.totalorder %s45, %s46
    %p58 = scmp.eq.s32.totalorder %s15, 2
    %p59 = por %p57, %p58
    %p61 = scmp.ne.s32.totalorder %s46, %s60
    %p62 = scmp.eq.s32.totalorder %s15, 0
    %p63 = por %p61, %p62
    %s65 = sadd.s32 %s64, 1
    %p68 = scmp.eq.s32.totalorder %s9, 2
    %p69 = scmp.ne.s32.totalorder %s64, %s66
    %p70 = scmp.eq.s32.totalorder %s9, 0
    %p71 = por %p69, %p70
    %p72 = scmp.ne.s32.totalorder %s64, %s66
    %p73 = scmp.eq.s32.totalorder %s14, 2
    %p74 = por %p72, %p73
    %p75 = scmp.ne.s32.totalorder %s66, %s67
    %p76 = scmp.eq.s32.totalorder %s14, 0
    %p77 = por %p75, %p76
    %p78 = scmp.ne.s32.totalorder %s66, %s67
    %p79 = scmp.eq.s32.totalorder %s15, 2
    %p80 = por %p78, %p79
    %p82 = scmp.ne.s32.totalorder %s67, %s81
    %p83 = scmp.eq.s32.totalorder %s15, 0
    %p84 = por %p82, %p83
    %s85 = ssub.s32 %s9, %s16
    %p86 = scmp.eq.s32.totalorder %s85, 0
    %s88 = sadd.s32 %s87, 1
    %s89 = scalar_select %p86, %s87, %s88
    %p92 = pneg %p86
    %p93 = scmp.eq.s32.totalorder %s9, 2
    %p94 = por %p92, %p93
    %p95 = scmp.ne.s32.totalorder %s87, %s90
    %p96 = scmp.eq.s32.totalorder %s9, 0
    %p97 = por %p95, %p96
    %p98 = scmp.ne.s32.totalorder %s87, %s90
    %p99 = scmp.eq.s32.totalorder %s14, 2
    %p100 = por %p98, %p99
    %p101 = scmp.ne.s32.totalorder %s90, %s91
    %p102 = scmp.eq.s32.totalorder %s14, 0
    %p103 = por %p101, %p102
    %p104 = scmp.ne.s32.totalorder %s90, %s91
    %p105 = scmp.eq.s32.totalorder %s15, 2
    %p106 = por %p104, %p105
    %p108 = scmp.ne.s32.totalorder %s91, %s107
    %p109 = scmp.eq.s32.totalorder %s15, 0
    %p110 = por %p108, %p109
    %p111 = scmp.le.s32.totalorder 1, %s9
    %p112 = scmp.lt.s32.totalorder %s9, 4
    %p113 = pnand %p111, %p112
    %p114 = pneg %p113
    // Predicated region
    $region9: #{sequential_forward.2} parent=5 // pred_check
      _
    $region10: #{sequential_forward.2} parent=5 // pred_check_branch
      %116 = sbr.rel (%p113) target = $region12
    $region11: #{sequential_forward.2} parent=5 // pred_region
      %s117 = ssub.s32 %s9, 1
      // Predicated region
      $region13: #{sequential_forward.2} parent=11 // pred_check
        %p118 = pneg %p56
      $region14: #{sequential_forward.2} parent=11 // pred_check_branch
        %120 = sbr.rel (%p118) target = $region16
      $region15: #{sequential_forward.2} parent=11 // pred_region
        _
      $region16: #{sequential_forward.2} parent=11 // pred_fallthru
        _
      // Predicated region
      $region17: #{sequential_forward.2} parent=11 // pred_check
        %p121 = pneg %p77
      $region18: #{sequential_forward.2} parent=11 // pred_check_branch
        %123 = sbr.rel (%p121) target = $region20
      $region19: #{sequential_forward.2} parent=11 // pred_region
        _
      $region20: #{sequential_forward.2} parent=11 // pred_fallthru
        _
    $region12: #{sequential_forward.2} parent=5 // pred_fallthru
      _
    %p124 = scmp.lt.s32.totalorder %s9, 3
    // Predicated region
    $region21: #{sequential_forward.2} parent=5 // pred_check
      %p125 = pneg %p124
    $region22: #{sequential_forward.2} parent=5 // pred_check_branch
      %127 = sbr.rel (%p125) target = $region24
    $region23: #{sequential_forward.2} parent=5 // pred_region
      // Predicated region
      $region25: #{sequential_forward.2} parent=23 // pred_check
        %p128 = pneg %p29
      $region26: #{sequential_forward.2} parent=23 // pred_check_branch
        %130 = sbr.rel (%p128) target = $region28
      $region27: #{sequential_forward.2} parent=23 // pred_region
        %s131 = smul.u32 16, %s9
        %p132 = scmp.lt.s32.totalorder %s131, 47
        %s133 = scalar_select %p132, %s131, 47
        %s134 = smul.addr %s133, 4
        %s135 = scalar_lea.vmem %s0, %s134
        %s136 = smul.u32 16, %s9
      $region28: #{sequential_forward.2} parent=23 // pred_fallthru
        _
    $region24: #{sequential_forward.2} parent=5 // pred_fallthru
      _
    %p137 = scmp.le.s32.totalorder 1, %s9
    %p138 = scmp.lt.s32.totalorder %s9, 4
    %p139 = pnand %p137, %p138
    %p140 = pneg %p139
    // Predicated region
    $region29: #{sequential_forward.2} parent=5 // pred_check
      _
    $region30: #{sequential_forward.2} parent=5 // pred_check_branch
      %142 = sbr.rel (%p139) target = $region32
    $region31: #{sequential_forward.2} parent=5 // pred_region
      %s143 = ssub.s32 %s9, 1
      %s144 = smul.u32 16, %s14
      %p145 = scmp.lt.s32.totalorder %s144, 47
      %s146 = scalar_select %p145, %s144, 47
      %s147 = smul.addr %s146, 4
      %s148 = scalar_lea.vmem %s0, %s147
      %p149 = pneg %p35
      %p150 = pneg %p32
      %p151 = pneg %p56
      %p152 = pneg %p53
      %p153 = pneg %p77
      %p154 = pneg %p74
      %p155 = pneg %p103
      %p156 = pneg %p100
      %s157 = smul.u32 16, %s14
      %p158 = scmp.lt.s32.totalorder %s157, 47
      %s159 = scalar_select %p158, %s157, 47
      %s160 = smul.addr %s159, 8
      %s161 = scalar_lea.vmem %s3, %s160
      %s162 = smul.u32 16, %s14
      %p163 = scmp.lt.s32.totalorder %s162, 47
      %s164 = scalar_select %p163, %s162, 47
      %s165 = smul.addr %s164, 4
      %s166 = scalar_lea.vmem %s0, %s165
      %s167 = smul.u32 16, %s14
      %s168 = smul.u32 16, %s14
      %p169 = scmp.lt.s32.totalorder %s168, 47
      %s170 = scalar_select %p169, %s168, 47
      %s171 = smul.addr %s170, 8
      %s172 = scalar_lea.vmem %s3, %s171
      %s173 = smul.u32 16, %s14
      %v175 = vld [vmem:[%s166] sm:$0xf]
      %v176 = vld [vmem:[%s166 + $0x4] sm:$0xf]
      %v177 = vld [vmem:[%s166 + $0x8] sm:$0xf]
      %v178 = vld [vmem:[%s166 + $0xc] sm:$0xf]
      %v179 = vld [vmem:[%s166 + $0x10] sm:$0xf]
      %v180 = vld [vmem:[%s166 + $0x14] sm:$0xf]
      %v181 = vld [vmem:[%s166 + $0x18] sm:$0xf]
      %v182 = vld [vmem:[%s166 + $0x1c] sm:$0xf]
      %v183 = vld [vmem:[%s166 + $0x20] sm:$0xf]
      %v184 = vld [vmem:[%s166 + $0x24] sm:$0xf]
      %v185 = vld [vmem:[%s166 + $0x28] sm:$0xf]
      %v186 = vld [vmem:[%s166 + $0x2c] sm:$0xf]
      %v187 = vld [vmem:[%s166 + $0x30] sm:$0xf]
      %v188 = vld [vmem:[%s166 + $0x34] sm:$0xf]
      %v189 = vld [vmem:[%s166 + $0x38] sm:$0xf]
      %v190 = vld [vmem:[%s166 + $0x3c] sm:$0xf]
      %v191 = vld [vmem:[%s1] sm:$0xf]
      %v192 = vld [vmem:[%s1 + $0x4] sm:$0xf]
      %v193 = vld [vmem:[%s1 + $0x8] sm:$0xf]
      %v194 = vld [vmem:[%s1 + $0xc] sm:$0xf]
      %v195 = vld [vmem:[%s2] sm:$0x1]
      %v197 = vlaneseq
      %v198 = vshrl.u32 %v197, 7
      %v199 = vsub.s32 0, %v198
      %v200 = vrot.slane %v195, %v199
      %v218 = vunpack.c.l.b16 %v175
      %v219 = vunpack.c.l.b16 %v176
      %v220 = vunpack.c.l.b16 %v177
      %v221 = vunpack.c.l.b16 %v178
      %v222 = vunpack.c.l.b16 %v179
      %v223 = vunpack.c.l.b16 %v180
      %v224 = vunpack.c.l.b16 %v181
      %v225 = vunpack.c.l.b16 %v182
      %v226 = vunpack.c.l.b16 %v183
      %v227 = vunpack.c.l.b16 %v184
      %v228 = vunpack.c.l.b16 %v185
      %v229 = vunpack.c.l.b16 %v186
      %v230 = vunpack.c.l.b16 %v187
      %v231 = vunpack.c.l.b16 %v188
      %v232 = vunpack.c.l.b16 %v189
      %v233 = vunpack.c.l.b16 %v190
      %v234 = vpack.c.b16 %v219, %v218
      %v235 = vpack.c.b16 %v221, %v220
      %v236 = vpack.c.b16 %v223, %v222
      %v237 = vpack.c.b16 %v225, %v224
      %v238 = vpack.c.b16 %v227, %v226
      %v239 = vpack.c.b16 %v229, %v228
      %v240 = vpack.c.b16 %v231, %v230
      %v241 = vpack.c.b16 %v233, %v232
      %v246 = vunpack.c.l.b16 %v191
      %v247 = vunpack.c.l.b16 %v192
      %v248 = vunpack.c.l.b16 %v193
      %v249 = vunpack.c.l.b16 %v194
      %v250 = vpack.c.b16 %v247, %v246
      %v251 = vpack.c.b16 %v249, %v248
      %vm254 = vcmask 261120
      %v256 = vsel %vm254, %v234, 0
      %v259 = vsel %vm254, %v235, 0
      %v262 = vsel %vm254, %v236, 0
      %v265 = vsel %vm254, %v237, 0
      %v268 = vsel %vm254, %v238, 0
      %v271 = vsel %vm254, %v239, 0
      %v274 = vsel %vm254, %v240, 0
      %v277 = vsel %vm254, %v241, 0
      %279 = vmatprep.subr.bf16.mxu0 0
      %280 = vmatpush1.bf16.msra.mxu0 %v250
      %281 = vmatprep.subr.bf16.mxu0 0
      %282 = vmatpush1.bf16.msra.mxu0 %v251
      %283 = vmatprep.subr.bf16.mxu0 0
      %284 = vmatpush1.bf16.msra.mxu0 0
      %285 = vmatprep.subr.bf16.mxu0 0
      %286 = vmatpush1.bf16.msra.mxu0 0
      %287 = vmatprep.subr.bf16.mxu0 0
      %288 = vmatpush1.bf16.msra.mxu0 0
      %289 = vmatprep.subr.bf16.mxu0 0
      %290 = vmatpush1.bf16.msra.mxu0 0
      %291 = vmatprep.subr.bf16.mxu0 0
      %292 = vmatpush1.bf16.msra.mxu0 0
      %293 = vmatprep.subr.bf16.mxu0 0
      %294 = vmatpush1.bf16.msra.mxu0 0
      %295 = vmatprep.subr.bf16.mxu0 0
      %296 = vmatpush1.bf16.msra.mxu0 0
      %297 = vmatprep.subr.bf16.mxu0 0
      %298 = vmatpush1.bf16.msra.mxu0 0
      %299 = vmatprep.subr.bf16.mxu0 0
      %300 = vmatpush1.bf16.msra.mxu0 0
      %301 = vmatprep.subr.bf16.mxu0 0
      %302 = vmatpush1.bf16.msra.mxu0 0
      %303 = vmatprep.subr.bf16.mxu0 0
      %304 = vmatpush1.bf16.msra.mxu0 0
      %305 = vmatprep.subr.bf16.mxu0 0
      %306 = vmatpush1.bf16.msra.mxu0 0
      %307 = vmatprep.subr.bf16.mxu0 0
      %308 = vmatpush1.bf16.msra.mxu0 0
      %309 = vmatprep.subr.bf16.mxu0 0
      %310 = vmatpush1.bf16.msra.mxu0 0
      %311 = vmatprep.mubr.bf16.mxu0 0
      %312 = vmatmul.mubr.bf16.gmra.mrb[0].mxu0 %v256
      %v313 = vpop.f32.mrb[0].mxu0
      %v314 = vadd.f32 %v200, %v313
      %v315 = vpop.f32.mrb[0].mxu0
      %v316 = vpop.f32.mrb[0].mxu0
      %v317 = vadd.f32 %v200, %v316
      %v318 = vpop.f32.mrb[0].mxu0
      %319 = vmatprep.mubr.bf16.mxu0 0
      %320 = vmatmul.mubr.bf16.gmra.mrb[0].mxu0 %v259
      %v321 = vpop.f32.mrb[0].mxu0
      %v322 = vadd.f32 %v200, %v321
      %v323 = vpop.f32.mrb[0].mxu0
      %v324 = vpop.f32.mrb[0].mxu0
      %v325 = vadd.f32 %v200, %v324
      %v326 = vpop.f32.mrb[0].mxu0
      %327 = vmatprep.mubr.bf16.mxu0 0
      %328 = vmatmul.mubr.bf16.gmra.mrb[0].mxu0 %v262
      %v329 = vpop.f32.mrb[0].mxu0
      %v330 = vadd.f32 %v200, %v329
      %v331 = vpop.f32.mrb[0].mxu0
      %v332 = vpop.f32.mrb[0].mxu0
      %v333 = vadd.f32 %v200, %v332
      %v334 = vpop.f32.mrb[0].mxu0
      %335 = vmatprep.mubr.bf16.mxu0 0
      %336 = vmatmul.mubr.bf16.gmra.mrb[0].mxu0 %v265
      %v337 = vpop.f32.mrb[0].mxu0
      %v338 = vadd.f32 %v200, %v337
      %v339 = vpop.f32.mrb[0].mxu0
      %v340 = vpop.f32.mrb[0].mxu0
      %v341 = vadd.f32 %v200, %v340
      %v342 = vpop.f32.mrb[0].mxu0
      %343 = vmatprep.mubr.bf16.mxu0 0
      %344 = vmatmul.mubr.bf16.gmra.mrb[0].mxu0 %v268
      %v345 = vpop.f32.mrb[0].mxu0
      %v346 = vadd.f32 %v200, %v345
      %v347 = vpop.f32.mrb[0].mxu0
      %v348 = vpop.f32.mrb[0].mxu0
      %v349 = vadd.f32 %v200, %v348
      %v350 = vpop.f32.mrb[0].mxu0
      %351 = vmatprep.mubr.bf16.mxu0 0
      %352 = vmatmul.mubr.bf16.gmra.mrb[0].mxu0 %v271
      %v353 = vpop.f32.mrb[0].mxu0
      %v354 = vadd.f32 %v200, %v353
      %v355 = vpop.f32.mrb[0].mxu0
      %v356 = vpop.f32.mrb[0].mxu0
      %v357 = vadd.f32 %v200, %v356
      %v358 = vpop.f32.mrb[0].mxu0
      %359 = vmatprep.mubr.bf16.mxu0 0
      %360 = vmatmul.mubr.bf16.gmra.mrb[0].mxu0 %v274
      %v361 = vpop.f32.mrb[0].mxu0
      %v362 = vadd.f32 %v200, %v361
      %v363 = vpop.f32.mrb[0].mxu0
      %v364 = vpop.f32.mrb[0].mxu0
      %v365 = vadd.f32 %v200, %v364
      %v366 = vpop.f32.mrb[0].mxu0
      %367 = vmatprep.mubr.bf16.mxu0 0
      %368 = vmatmul.mubr.bf16.gmra.mrb[0].mxu0 %v277
      %v369 = vpop.f32.mrb[0].mxu0
      %v370 = vadd.f32 %v200, %v369
      %v371 = vpop.f32.mrb[0].mxu0
      %v372 = vpop.f32.mrb[0].mxu0
      %v373 = vadd.f32 %v200, %v372
      %v374 = vpop.f32.mrb[0].mxu0
      %375 = vdwg.mxu0
      %v376 = vmax.f32 %v314, 0.0
      %v377 = vmax.f32 %v317, 0.0
      %v378 = vmax.f32 %v322, 0.0
      %v379 = vmax.f32 %v325, 0.0
      %v380 = vmax.f32 %v330, 0.0
      %v381 = vmax.f32 %v333, 0.0
      %v382 = vmax.f32 %v338, 0.0
      %v383 = vmax.f32 %v341, 0.0
      %v384 = vmax.f32 %v346, 0.0
      %v385 = vmax.f32 %v349, 0.0
      %v386 = vmax.f32 %v354, 0.0
      %v387 = vmax.f32 %v357, 0.0
      %v388 = vmax.f32 %v362, 0.0
      %v389 = vmax.f32 %v365, 0.0
      %v390 = vmax.f32 %v370, 0.0
      %v391 = vmax.f32 %v373, 0.0
      %392 = vst [vmem:[%s172] sm:$0xff] %v376
      %393 = vst [vmem:[%s172 + $0x8] sm:$0xff] %v377
      %394 = vst [vmem:[%s172 + $0x10] sm:$0xff] %v378
      %395 = vst [vmem:[%s172 + $0x18] sm:$0xff] %v379
      %396 = vst [vmem:[%s172 + $0x20] sm:$0xff] %v380
      %397 = vst [vmem:[%s172 + $0x28] sm:$0xff] %v381
      %398 = vst [vmem:[%s172 + $0x30] sm:$0xff] %v382
      %399 = vst [vmem:[%s172 + $0x38] sm:$0xff] %v383
      %400 = vst [vmem:[%s172 + $0x40] sm:$0xff] %v384
      %401 = vst [vmem:[%s172 + $0x48] sm:$0xff] %v385
      %402 = vst [vmem:[%s172 + $0x50] sm:$0xff] %v386
      %403 = vst [vmem:[%s172 + $0x58] sm:$0xff] %v387
      %404 = vst [vmem:[%s172 + $0x60] sm:$0xff] %v388
      %405 = vst [vmem:[%s172 + $0x68] sm:$0xff] %v389
      %406 = vst [vmem:[%s172 + $0x70] sm:$0xff] %v390
      %407 = vst [vmem:[%s172 + $0x78] sm:$0xff] %v391
      %s408 = smul.u32 16, %s14
      %p409 = scmp.lt.s32.totalorder %s408, 47
      %s410 = scalar_select %p409, %s408, 47
      %s411 = smul.addr %s410, 8
      %s412 = scalar_lea.vmem %s3, %s411
      // Predicated region
      $region33: #{sequential_forward.2} parent=31 // pred_check
        %p413 = pneg %p100
      $region34: #{sequential_forward.2} parent=31 // pred_check_branch
        %415 = sbr.rel (%p413) target = $region36
      $region35: #{sequential_forward.2} parent=31 // pred_region
        %s416 = smul.u32 16, %s14
      $region36: #{sequential_forward.2} parent=31 // pred_fallthru
        _
    $region32: #{sequential_forward.2} parent=5 // pred_fallthru
      _
    %p417 = scmp.le.s32.totalorder 2, %s9
    // Predicated region
    $region37: #{sequential_forward.2} parent=5 // pred_check
      %p418 = pneg %p417
    $region38: #{sequential_forward.2} parent=5 // pred_check_branch
      %420 = sbr.rel (%p418) target = $region40
    $region39: #{sequential_forward.2} parent=5 // pred_region
      %s421 = ssub.s32 %s9, 2
      // Predicated region
      $region41: #{sequential_forward.2} parent=39 // pred_check
        %p422 = pneg %p106
      $region42: #{sequential_forward.2} parent=39 // pred_check_branch
        %424 = sbr.rel (%p422) target = $region44
      $region43: #{sequential_forward.2} parent=39 // pred_region
        %s425 = smul.u32 16, %s15
        %p426 = scmp.lt.s32.totalorder %s425, 47
        %s427 = scalar_select %p426, %s425, 47
        %s428 = smul.addr %s427, 8
        %s429 = scalar_lea.vmem %s3, %s428
      $region44: #{sequential_forward.2} parent=39 // pred_fallthru
        _
    $region40: #{sequential_forward.2} parent=5 // pred_fallthru
      _
  $region6: #{sequential_forward.2} parent=0 // loop_footer
    %s13 = sadd.s32 1, %s9
  $region7: #{sequential_forward.2} parent=0 // loop_footer_branch
    %8 = sbr.rel target = $region3
  $region8: #{sequential_forward.2} parent=0 // loop_exit
    _

// kernel: sequential_forward.3
$region0: #{sequential_forward.3}
  #allocation0 [shape = 'u32[]', space=smem, size = 0x4, offset = 0x4, fixed_abs, tag = 'smem constant byte address 0x4 - core index']
  #allocation1 [shape = 'u32[144,128]{1,0:T(1,128)}', space=vmem, size = 0x12000, scoped, tag = 'internal scratch']
  %s0 = inlined_call_operand.vmem [shape: bf16[128,504], index: 0, kind: input, shape index: {}]
  %s1 = inlined_call_operand.vmem [shape: bf16[504,128], index: 1, kind: input, shape index: {}]
  %s2 = inlined_call_operand.vmem [shape: f32[1,128], index: 2, kind: input, shape index: {}]
  %s3 = inlined_call_operand.hbm [shape: f32[128,128], index: 3, kind: output, shape index: {}]
  %s4 = sld [smem:[#allocation0]]
  $region22: #{sequential_forward.3} parent=0
    _
  %s6 = ssub.s32 1, %s4
  %s7 = scalar_select 0, %s6, %s4
  $region1: #{sequential_forward.3} parent=0
    #allocation2 [shape = 'u8[65536]{0}', space=vmem, size = 0x10000, scoped, tag = 'output window, operand 0, single buffered']
    #allocation3 [shape = 's32[1]{0}', space=sflag, size = 0x4, scoped, tag = 'scoped memory for sequential_forward.3']
    %8 = vsyncpa [#allocation3], 0
    // Predicated region
    $region2: #{sequential_forward.3} parent=1 // pred_check
      _
    $region3: #{sequential_forward.3} parent=1 // pred_check_branch
      %10 = sbr.rel (0) target = $region5
    $region4: #{sequential_forward.3} parent=1 // pred_region
      _
    $region5: #{sequential_forward.3} parent=1 // pred_fallthru
      _
    // Predicated region
    $region6: #{sequential_forward.3} parent=1 // pred_check
      _
    $region7: #{sequential_forward.3} parent=1 // pred_check_branch
      %12 = sbr.rel (0) target = $region9
    $region8: #{sequential_forward.3} parent=1 // pred_region
      _
    $region9: #{sequential_forward.3} parent=1 // pred_fallthru
      _
    // Predicated region
    $region10: #{sequential_forward.3} parent=1 // pred_check
      _
    $region11: #{sequential_forward.3} parent=1 // pred_check_branch
      %14 = sbr.rel (0) target = $region13
    $region12: #{sequential_forward.3} parent=1 // pred_region
      _
    $region13: #{sequential_forward.3} parent=1 // pred_fallthru
      _
    %v16 = vld [vmem:[%s0] sm:$0xff]
    %v17 = vld [vmem:[%s0 + $0x8] sm:$0xff]
    %v18 = vld [vmem:[%s0 + $0x10] sm:$0xff]
    %v19 = vld [vmem:[%s0 + $0x18] sm:$0xff]
    %v20 = vld [vmem:[%s0 + $0x20] sm:$0xff]
    %v21 = vld [vmem:[%s0 + $0x28] sm:$0xff]
    %v22 = vld [vmem:[%s0 + $0x30] sm:$0xff]
    %v23 = vld [vmem:[%s0 + $0x38] sm:$0xff]
    %v24 = vld [vmem:[%s0 + $0x40] sm:$0xff]
    %v25 = vld [vmem:[%s0 + $0x48] sm:$0xff]
    %v26 = vld [vmem:[%s0 + $0x50] sm:$0xff]
    %v27 = vld [vmem:[%s0 + $0x58] sm:$0xff]
    %v28 = vld [vmem:[%s0 + $0x60] sm:$0xff]
    %v29 = vld [vmem:[%s0 + $0x68] sm:$0xff]
    %v30 = vld [vmem:[%s0 + $0x70] sm:$0xff]
    %v31 = vld [vmem:[%s0 + $0x78] sm:$0xff]
    %v32 = vld [vmem:[%s0 + $0x80] sm:$0xff]
    %v33 = vld [vmem:[%s0 + $0x88] sm:$0xff]
    %v34 = vld [vmem:[%s0 + $0x90] sm:$0xff]
    %v35 = vld [vmem:[%s0 + $0x98] sm:$0xff]
    %v36 = vld [vmem:[%s0 + $0xa0] sm:$0xff]
    %v37 = vld [vmem:[%s0 + $0xa8] sm:$0xff]
    %v38 = vld [vmem:[%s0 + $0xb0] sm:$0xff]
    %v39 = vld [vmem:[%s0 + $0xb8] sm:$0xff]
    %v40 = vld [vmem:[%s0 + $0xc0] sm:$0xff]
    %v41 = vld [vmem:[%s0 + $0xc8] sm:$0xff]
    %v42 = vld [vmem:[%s0 + $0xd0] sm:$0xff]
    %v43 = vld [vmem:[%s0 + $0xd8] sm:$0xff]
    %v44 = vld [vmem:[%s0 + $0xe0] sm:$0xff]
    %v45 = vld [vmem:[%s0 + $0xe8] sm:$0xff]
    %v46 = vld [vmem:[%s0 + $0xf0] sm:$0xff]
    %v47 = vld [vmem:[%s0 + $0xf8] sm:$0xff]
    %v48 = vld [vmem:[%s1] sm:$0xf]
    %v49 = vld [vmem:[%s1 + $0x4] sm:$0xf]
    %v50 = vld [vmem:[%s1 + $0x8] sm:$0xf]
    %v51 = vld [vmem:[%s1 + $0xc] sm:$0xf]
    %v52 = vld [vmem:[%s1 + $0x10] sm:$0xf]
    %v53 = vld [vmem:[%s1 + $0x14] sm:$0xf]
    %v54 = vld [vmem:[%s1 + $0x18] sm:$0xf]
    %v55 = vld [vmem:[%s1 + $0x1c] sm:$0xf]
    %v56 = vld [vmem:[%s1 + $0x20] sm:$0xf]
    %v57 = vld [vmem:[%s1 + $0x24] sm:$0xf]
    %v58 = vld [vmem:[%s1 + $0x28] sm:$0xf]
    %v59 = vld [vmem:[%s1 + $0x2c] sm:$0xf]
    %v60 = vld [vmem:[%s1 + $0x30] sm:$0xf]
    %v61 = vld [vmem:[%s1 + $0x34] sm:$0xf]
    %v62 = vld [vmem:[%s1 + $0x38] sm:$0xf]
    %v63 = vld [vmem:[%s1 + $0x3c] sm:$0xf]
    %v64 = vld [vmem:[%s1 + $0x40] sm:$0xf]
    %v65 = vld [vmem:[%s1 + $0x44] sm:$0xf]
    %v66 = vld [vmem:[%s1 + $0x48] sm:$0xf]
    %v67 = vld [vmem:[%s1 + $0x4c] sm:$0xf]
    %v68 = vld [vmem:[%s1 + $0x50] sm:$0xf]
    %v69 = vld [vmem:[%s1 + $0x54] sm:$0xf]
    %v70 = vld [vmem:[%s1 + $0x58] sm:$0xf]
    %v71 = vld [vmem:[%s1 + $0x5c] sm:$0xf]
    %v72 = vld [vmem:[%s1 + $0x60] sm:$0xf]
    %v73 = vld [vmem:[%s1 + $0x64] sm:$0xf]
    %v74 = vld [vmem:[%s1 + $0x68] sm:$0xf]
    %v75 = vld [vmem:[%s1 + $0x6c] sm:$0xf]
    %v76 = vld [vmem:[%s1 + $0x70] sm:$0xf]
    %v77 = vld [vmem:[%s1 + $0x74] sm:$0xf]
    %v78 = vld [vmem:[%s1 + $0x78] sm:$0xf]
    %v79 = vld [vmem:[%s1 + $0x7c] sm:$0xf]
    %v80 = vld [vmem:[%s1 + $0x80] sm:$0xf]
    %v81 = vld [vmem:[%s1 + $0x84] sm:$0xf]
    %v82 = vld [vmem:[%s1 + $0x88] sm:$0xf]
    %v83 = vld [vmem:[%s1 + $0x8c] sm:$0xf]
    %v84 = vld [vmem:[%s1 + $0x90] sm:$0xf]
    %v85 = vld [vmem:[%s1 + $0x94] sm:$0xf]
    %v86 = vld [vmem:[%s1 + $0x98] sm:$0xf]
    %v87 = vld [vmem:[%s1 + $0x9c] sm:$0xf]
    %v88 = vld [vmem:[%s1 + $0xa0] sm:$0xf]
    %v89 = vld [vmem:[%s1 + $0xa4] sm:$0xf]
    %v90 = vld [vmem:[%s1 + $0xa8] sm:$0xf]
    %v91 = vld [vmem:[%s1 + $0xac] sm:$0xf]
    %v92 = vld [vmem:[%s1 + $0xb0] sm:$0xf]
    %v93 = vld [vmem:[%s1 + $0xb4] sm:$0xf]
    %v94 = vld [vmem:[%s1 + $0xb8] sm:$0xf]
    %v95 = vld [vmem:[%s1 + $0xbc] sm:$0xf]
    %v96 = vld [vmem:[%s1 + $0xc0] sm:$0xf]
    %v97 = vld [vmem:[%s1 + $0xc4] sm:$0xf]
    %v98 = vld [vmem:[%s1 + $0xc8] sm:$0xf]
    %v99 = vld [vmem:[%s1 + $0xcc] sm:$0xf]
    %v100 = vld [vmem:[%s1 + $0xd0] sm:$0xf]
    %v101 = vld [vmem:[%s1 + $0xd4] sm:$0xf]
    %v102 = vld [vmem:[%s1 + $0xd8] sm:$0xf]
    %v103 = vld [vmem:[%s1 + $0xdc] sm:$0xf]
    %v104 = vld [vmem:[%s1 + $0xe0] sm:$0xf]
    %v105 = vld [vmem:[%s1 + $0xe4] sm:$0xf]
    %v106 = vld [vmem:[%s1 + $0xe8] sm:$0xf]
    %v107 = vld [vmem:[%s1 + $0xec] sm:$0xf]
    %v108 = vld [vmem:[%s1 + $0xf0] sm:$0xf]
    %v109 = vld [vmem:[%s1 + $0xf4] sm:$0xf]
    %v110 = vld [vmem:[%s1 + $0xf8] sm:$0xf]
    %v111 = vld [vmem:[%s2] sm:$0x1]
    %v113 = vlaneseq
    %v114 = vshrl.u32 %v113, 7
    %v115 = vsub.s32 0, %v114
    %v116 = vrot.slane %v111, %v115
    %v150 = vunpack.c.l.b16 %v16
    %v151 = vunpack.c.h.b16 %v16
    %v152 = vunpack.c.l.b16 %v17
    %v153 = vunpack.c.h.b16 %v17
    %v154 = vunpack.c.l.b16 %v18
    %v155 = vunpack.c.h.b16 %v18
    %v156 = vunpack.c.l.b16 %v19
    %v157 = vunpack.c.h.b16 %v19
    %v158 = vunpack.c.l.b16 %v20
    %v159 = vunpack.c.h.b16 %v20
    %v160 = vunpack.c.l.b16 %v21
    %v161 = vunpack.c.h.b16 %v21
    %v162 = vunpack.c.l.b16 %v22
    %v163 = vunpack.c.h.b16 %v22
    %v164 = vunpack.c.l.b16 %v23
    %v165 = vunpack.c.h.b16 %v23
    %v166 = vunpack.c.l.b16 %v24
    %v167 = vunpack.c.h.b16 %v24
    %v168 = vunpack.c.l.b16 %v25
    %v169 = vunpack.c.h.b16 %v25
    %v170 = vunpack.c.l.b16 %v26
    %v171 = vunpack.c.h.b16 %v26
    %v172 = vunpack.c.l.b16 %v27
    %v173 = vunpack.c.h.b16 %v27
    %v174 = vunpack.c.l.b16 %v28
    %v175 = vunpack.c.h.b16 %v28
    %v176 = vunpack.c.l.b16 %v29
    %v177 = vunpack.c.h.b16 %v29
    %v178 = vunpack.c.l.b16 %v30
    %v179 = vunpack.c.h.b16 %v30
    %v180 = vunpack.c.l.b16 %v31
    %v181 = vunpack.c.h.b16 %v31
    %v182 = vunpack.c.l.b16 %v32
    %v183 = vunpack.c.h.b16 %v32
    %v184 = vunpack.c.l.b16 %v33
    %v185 = vunpack.c.h.b16 %v33
    %v186 = vunpack.c.l.b16 %v34
    %v187 = vunpack.c.h.b16 %v34
    %v188 = vunpack.c.l.b16 %v35
    %v189 = vunpack.c.h.b16 %v35
    %v190 = vunpack.c.l.b16 %v36
    %v191 = vunpack.c.h.b16 %v36
    %v192 = vunpack.c.l.b16 %v37
    %v193 = vunpack.c.h.b16 %v37
    %v194 = vunpack.c.l.b16 %v38
    %v195 = vunpack.c.h.b16 %v38
    %v196 = vunpack.c.l.b16 %v39
    %v197 = vunpack.c.h.b16 %v39
    %v198 = vunpack.c.l.b16 %v40
    %v199 = vunpack.c.h.b16 %v40
    %v200 = vunpack.c.l.b16 %v41
    %v201 = vunpack.c.h.b16 %v41
    %v202 = vunpack.c.l.b16 %v42
    %v203 = vunpack.c.h.b16 %v42
    %v204 = vunpack.c.l.b16 %v43
    %v205 = vunpack.c.h.b16 %v43
    %v206 = vunpack.c.l.b16 %v44
    %v207 = vunpack.c.h.b16 %v44
    %v208 = vunpack.c.l.b16 %v45
    %v209 = vunpack.c.h.b16 %v45
    %v210 = vunpack.c.l.b16 %v46
    %v211 = vunpack.c.h.b16 %v46
    %v212 = vunpack.c.l.b16 %v47
    %v213 = vunpack.c.h.b16 %v47
    %v214 = vpack.c.b16 %v154, %v150
    %v215 = vpack.c.b16 %v155, %v151
    %v216 = vpack.c.b16 %v156, %v152
    %v217 = vpack.c.b16 %v157, %v153
    %v218 = vpack.c.b16 %v162, %v158
    %v219 = vpack.c.b16 %v163, %v159
    %v220 = vpack.c.b16 %v164, %v160
    %v221 = vpack.c.b16 %v165, %v161
    %v222 = vpack.c.b16 %v170, %v166
    %v223 = vpack.c.b16 %v171, %v167
    %v224 = vpack.c.b16 %v172, %v168
    %v225 = vpack.c.b16 %v173, %v169
    %v226 = vpack.c.b16 %v178, %v174
    %v227 = vpack.c.b16 %v179, %v175
    %v228 = vpack.c.b16 %v180, %v176
    %v229 = vpack.c.b16 %v181, %v177
    %v230 = vpack.c.b16 %v186, %v182
    %v231 = vpack.c.b16 %v187, %v183
    %v232 = vpack.c.b16 %v188, %v184
    %v233 = vpack.c.b16 %v189, %v185
    %v234 = vpack.c.b16 %v194, %v190
    %v235 = vpack.c.b16 %v195, %v191
    %v236 = vpack.c.b16 %v196, %v192
    %v237 = vpack.c.b16 %v197, %v193
    %v238 = vpack.c.b16 %v202, %v198
    %v239 = vpack.c.b16 %v203, %v199
    %v240 = vpack.c.b16 %v204, %v200
    %v241 = vpack.c.b16 %v205, %v201
    %v242 = vpack.c.b16 %v210, %v206
    %v243 = vpack.c.b16 %v211, %v207
    %v244 = vpack.c.b16 %v212, %v208
    %v245 = vpack.c.b16 %v213, %v209
    %v333 = vunpack.c.l.b16 %v48
    %v334 = vunpack.c.l.b16 %v49
    %v335 = vunpack.c.l.b16 %v50
    %v336 = vunpack.c.l.b16 %v51
    %v337 = vunpack.c.l.b16 %v52
    %v338 = vunpack.c.l.b16 %v53
    %v339 = vunpack.c.l.b16 %v54
    %v340 = vunpack.c.l.b16 %v55
    %v341 = vunpack.c.l.b16 %v56
    %v342 = vunpack.c.l.b16 %v57
    %v343 = vunpack.c.l.b16 %v58
    %v344 = vunpack.c.l.b16 %v59
    %v345 = vunpack.c.l.b16 %v60
    %v346 = vunpack.c.l.b16 %v61
    %v347 = vunpack.c.l.b16 %v62
    %v348 = vunpack.c.l.b16 %v63
    %v349 = vunpack.c.l.b16 %v64
    %v350 = vunpack.c.l.b16 %v65
    %v351 = vunpack.c.l.b16 %v66
    %v352 = vunpack.c.l.b16 %v67
    %v353 = vunpack.c.l.b16 %v68
    %v354 = vunpack.c.l.b16 %v69
    %v355 = vunpack.c.l.b16 %v70
    %v356 = vunpack.c.l.b16 %v71
    %v357 = vunpack.c.l.b16 %v72
    %v358 = vunpack.c.l.b16 %v73
    %v359 = vunpack.c.l.b16 %v74
    %v360 = vunpack.c.l.b16 %v75
    %v361 = vunpack.c.l.b16 %v76
    %v362 = vunpack.c.l.b16 %v77
    %v363 = vunpack.c.l.b16 %v78
    %v364 = vunpack.c.l.b16 %v79
    %v365 = vunpack.c.l.b16 %v80
    %v366 = vunpack.c.l.b16 %v81
    %v367 = vunpack.c.l.b16 %v82
    %v368 = vunpack.c.l.b16 %v83
    %v369 = vunpack.c.l.b16 %v84
    %v370 = vunpack.c.l.b16 %v85
    %v371 = vunpack.c.l.b16 %v86
    %v372 = vunpack.c.l.b16 %v87
    %v373 = vunpack.c.l.b16 %v88
    %v374 = vunpack.c.l.b16 %v89
    %v375 = vunpack.c.l.b16 %v90
    %v376 = vunpack.c.l.b16 %v91
    %v377 = vunpack.c.l.b16 %v92
    %v378 = vunpack.c.l.b16 %v93
    %v379 = vunpack.c.l.b16 %v94
    %v380 = vunpack.c.l.b16 %v95
    %v381 = vunpack.c.l.b16 %v96
    %v382 = vunpack.c.l.b16 %v97
    %v383 = vunpack.c.l.b16 %v98
    %v384 = vunpack.c.l.b16 %v99
    %v385 = vunpack.c.l.b16 %v100
    %v386 = vunpack.c.l.b16 %v101
    %v387 = vunpack.c.l.b16 %v102
    %v388 = vunpack.c.l.b16 %v103
    %v389 = vunpack.c.l.b16 %v104
    %v390 = vunpack.c.l.b16 %v105
    %v391 = vunpack.c.l.b16 %v106
    %v392 = vunpack.c.l.b16 %v107
    %v393 = vunpack.c.l.b16 %v108
    %v394 = vunpack.c.l.b16 %v109
    %v395 = vunpack.c.l.b16 %v110
    %v396 = vpack.c.b16 %v334, %v333
    %v397 = vpack.c.b16 %v336, %v335
    %v398 = vpack.c.b16 %v338, %v337
    %v399 = vpack.c.b16 %v340, %v339
    %v400 = vpack.c.b16 %v342, %v341
    %v401 = vpack.c.b16 %v344, %v343
    %v402 = vpack.c.b16 %v346, %v345
    %v403 = vpack.c.b16 %v348, %v347
    %v404 = vpack.c.b16 %v350, %v349
    %v405 = vpack.c.b16 %v352, %v351
    %v406 = vpack.c.b16 %v354, %v353
    %v407 = vpack.c.b16 %v356, %v355
    %v408 = vpack.c.b16 %v358, %v357
    %v409 = vpack.c.b16 %v360, %v359
    %v410 = vpack.c.b16 %v362, %v361
    %v411 = vpack.c.b16 %v364, %v363
    %v412 = vpack.c.b16 %v366, %v365
    %v413 = vpack.c.b16 %v368, %v367
    %v414 = vpack.c.b16 %v370, %v369
    %v415 = vpack.c.b16 %v372, %v371
    %v416 = vpack.c.b16 %v374, %v373
    %v417 = vpack.c.b16 %v376, %v375
    %v418 = vpack.c.b16 %v378, %v377
    %v419 = vpack.c.b16 %v380, %v379
    %v420 = vpack.c.b16 %v382, %v381
    %v421 = vpack.c.b16 %v384, %v383
    %v422 = vpack.c.b16 %v386, %v385
    %v423 = vpack.c.b16 %v388, %v387
    %v424 = vpack.c.b16 %v390, %v389
    %v425 = vpack.c.b16 %v392, %v391
    %v426 = vpack.c.b16 %v394, %v393
    %v427 = vpack.c.b16 %v395, %v395
    %vm459 = vcmask 982016
    %v461 = vsel %vm459, %v217, 0
    %v464 = vsel %vm459, %v221, 0
    %v467 = vsel %vm459, %v225, 0
    %v470 = vsel %vm459, %v229, 0
    %v473 = vsel %vm459, %v233, 0
    %v476 = vsel %vm459, %v237, 0
    %v479 = vsel %vm459, %v241, 0
    %v482 = vsel %vm459, %v245, 0
    %vm484 = vcmask 1043456
    %v486 = vsel %vm484, %v427, 0
    %488 = vmatprep.subr.bf16.mxu0 0
    %489 = vmatpush1.bf16.msra.mxu0 %v396
    %490 = vmatprep.subr.bf16.mxu0 0
    %491 = vmatpush1.bf16.msra.mxu0 %v397
    %492 = vmatprep.subr.bf16.mxu0 0
    %493 = vmatpush1.bf16.msra.mxu0 %v398
    %494 = vmatprep.subr.bf16.mxu0 0
    %495 = vmatpush1.bf16.msra.mxu0 %v399
    %496 = vmatprep.subr.bf16.mxu0 0
    %497 = vmatpush1.bf16.msra.mxu0 %v400
    %498 = vmatprep.subr.bf16.mxu0 0
    %499 = vmatpush1.bf16.msra.mxu0 %v401
    %500 = vmatprep.subr.bf16.mxu0 0
    %501 = vmatpush1.bf16.msra.mxu0 %v402
    %502 = vmatprep.subr.bf16.mxu0 0
    %503 = vmatpush1.bf16.msra.mxu0 %v403
    %504 = vmatprep.subr.bf16.mxu0 0
    %505 = vmatpush1.bf16.msra.mxu0 %v404
    %506 = vmatprep.subr.bf16.mxu0 0
    %507 = vmatpush1.bf16.msra.mxu0 %v405
    %508 = vmatprep.subr.bf16.mxu0 0
    %509 = vmatpush1.bf16.msra.mxu0 %v406
    %510 = vmatprep.subr.bf16.mxu0 0
    %511 = vmatpush1.bf16.msra.mxu0 %v407
    %512 = vmatprep.subr.bf16.mxu0 0
    %513 = vmatpush1.bf16.msra.mxu0 %v408
    %514 = vmatprep.subr.bf16.mxu0 0
    %515 = vmatpush1.bf16.msra.mxu0 %v409
    %516 = vmatprep.subr.bf16.mxu0 0
    %517 = vmatpush1.bf16.msra.mxu0 %v410
    %518 = vmatprep.subr.bf16.mxu0 0
    %519 = vmatpush1.bf16.msra.mxu0 %v411
    %520 = vmatprep.mubr.bf16.mxu0 %v215
    %521 = vmatmul.mubr.bf16.gmra.mrb[0].mxu0 %v214
    %v522 = vpop.f32.mrb[0].mxu0
    %v523 = vadd.f32 %v116, %v522
    %v524 = vpop.f32.mrb[0].mxu0
    %v525 = vpop.f32.mrb[0].mxu0
    %v526 = vadd.f32 %v116, %v525
    %v527 = vpop.f32.mrb[0].mxu0
    %528 = vmatprep.mubr.bf16.mxu0 %v219
    %529 = vmatmul.mubr.bf16.gmra.mrb[0].mxu0 %v218
    %v530 = vpop.f32.mrb[0].mxu0
    %v531 = vadd.f32 %v116, %v530
    %v532 = vpop.f32.mrb[0].mxu0
    %v533 = vpop.f32.mrb[0].mxu0
    %v534 = vadd.f32 %v116, %v533
    %v535 = vpop.f32.mrb[0].mxu0
    %536 = vmatprep.mubr.bf16.mxu0 %v223
    %537 = vmatmul.mubr.bf16.gmra.mrb[0].mxu0 %v222
    %v538 = vpop.f32.mrb[0].mxu0
    %v539 = vadd.f32 %v116, %v538
    %v540 = vpop.f32.mrb[0].mxu0
    %v541 = vpop.f32.mrb[0].mxu0
    %v542 = vadd.f32 %v116, %v541
    %v543 = vpop.f32.mrb[0].mxu0
    %544 = vmatprep.mubr.bf16.mxu0 %v227
    %545 = vmatmul.mubr.bf16.gmra.mrb[0].mxu0 %v226
    %v546 = vpop.f32.mrb[0].mxu0
    %v547 = vadd.f32 %v116, %v546
    %v548 = vpop.f32.mrb[0].mxu0
    %v549 = vpop.f32.mrb[0].mxu0
    %v550 = vadd.f32 %v116, %v549
    %v551 = vpop.f32.mrb[0].mxu0
    %552 = vmatprep.mubr.bf16.mxu0 %v231
    %553 = vmatmul.mubr.bf16.gmra.mrb[0].mxu0 %v230
    %v554 = vpop.f32.mrb[0].mxu0
    %v555 = vadd.f32 %v116, %v554
    %v556 = vpop.f32.mrb[0].mxu0
    %v557 = vpop.f32.mrb[0].mxu0
    %v558 = vadd.f32 %v116, %v557
    %v559 = vpop.f32.mrb[0].mxu0
    %560 = vmatprep.mubr.bf16.mxu0 %v235
    %561 = vmatmul.mubr.bf16.gmra.mrb[0].mxu0 %v234
    %v562 = vpop.f32.mrb[0].mxu0
    %v563 = vadd.f32 %v116, %v562
    %v564 = vpop.f32.mrb[0].mxu0
    %v565 = vpop.f32.mrb[0].mxu0
    %v566 = vadd.f32 %v116, %v565
    %v567 = vpop.f32.mrb[0].mxu0
    %568 = vmatprep.mubr.bf16.mxu0 %v239
    %569 = vmatmul.mubr.bf16.gmra.mrb[0].mxu0 %v238
    %v570 = vpop.f32.mrb[0].mxu0
    %v571 = vadd.f32 %v116, %v570
    %v572 = vpop.f32.mrb[0].mxu0
    %v573 = vpop.f32.mrb[0].mxu0
    %v574 = vadd.f32 %v116, %v573
    %v575 = vpop.f32.mrb[0].mxu0
    %576 = vmatprep.mubr.bf16.mxu0 %v243
    %577 = vmatmul.mubr.bf16.gmra.mrb[0].mxu0 %v242
    %v578 = vpop.f32.mrb[0].mxu0
    %v579 = vadd.f32 %v116, %v578
    %v580 = vpop.f32.mrb[0].mxu0
    %v581 = vpop.f32.mrb[0].mxu0
    %v582 = vadd.f32 %v116, %v581
    %v583 = vpop.f32.mrb[0].mxu0
    %584 = vdwg.mxu0
    %585 = vmatprep.subr.bf16.mxu0 0
    %586 = vmatpush1.bf16.msra.mxu0 %v412
    %587 = vmatprep.subr.bf16.mxu0 0
    %588 = vmatpush1.bf16.msra.mxu0 %v413
    %589 = vmatprep.subr.bf16.mxu0 0
    %590 = vmatpush1.bf16.msra.mxu0 %v414
    %591 = vmatprep.subr.bf16.mxu0 0
    %592 = vmatpush1.bf16.msra.mxu0 %v415
    %593 = vmatprep.subr.bf16.mxu0 0
    %594 = vmatpush1.bf16.msra.mxu0 %v416
    %595 = vmatprep.subr.bf16.mxu0 0
    %596 = vmatpush1.bf16.msra.mxu0 %v417
    %597 = vmatprep.subr.bf16.mxu0 0
    %598 = vmatpush1.bf16.msra.mxu0 %v418
    %599 = vmatprep.subr.bf16.mxu0 0
    %600 = vmatpush1.bf16.msra.mxu0 %v419
    %601 = vmatprep.subr.bf16.mxu0 0
    %602 = vmatpush1.bf16.msra.mxu0 %v420
    %603 = vmatprep.subr.bf16.mxu0 0
    %604 = vmatpush1.bf16.msra.mxu0 %v421
    %605 = vmatprep.subr.bf16.mxu0 0
    %606 = vmatpush1.bf16.msra.mxu0 %v422
    %607 = vmatprep.subr.bf16.mxu0 0
    %608 = vmatpush1.bf16.msra.mxu0 %v423
    %609 = vmatprep.subr.bf16.mxu0 0
    %610 = vmatpush1.bf16.msra.mxu0 %v424
    %611 = vmatprep.subr.bf16.mxu0 0
    %612 = vmatpush1.bf16.msra.mxu0 %v425
    %613 = vmatprep.subr.bf16.mxu0 0
    %614 = vmatpush1.bf16.msra.mxu0 %v426
    %615 = vmatprep.subr.bf16.mxu0 0
    %616 = vmatpush1.bf16.msra.mxu0 %v486
    %617 = vmatprep.mubr.bf16.mxu0 %v461
    %618 = vmatmul.mubr.bf16.gmra.mrb[0].mxu0 %v216
    %v619 = vpop.f32.mrb[0].mxu0
    %v620 = vadd.f32 %v523, %v619
    %v621 = vpop.f32.mrb[0].mxu0
    %v622 = vpop.f32.mrb[0].mxu0
    %v623 = vadd.f32 %v526, %v622
    %v624 = vpop.f32.mrb[0].mxu0
    %625 = vmatprep.mubr.bf16.mxu0 %v464
    %626 = vmatmul.mubr.bf16.gmra.mrb[0].mxu0 %v220
    %v627 = vpop.f32.mrb[0].mxu0
    %v628 = vadd.f32 %v531, %v627
    %v629 = vpop.f32.mrb[0].mxu0
    %v630 = vpop.f32.mrb[0].mxu0
    %v631 = vadd.f32 %v534, %v630
    %v632 = vpop.f32.mrb[0].mxu0
    %633 = vmatprep.mubr.bf16.mxu0 %v467
    %634 = vmatmul.mubr.bf16.gmra.mrb[0].mxu0 %v224
    %v635 = vpop.f32.mrb[0].mxu0
    %v636 = vadd.f32 %v539, %v635
    %v637 = vpop.f32.mrb[0].mxu0
    %v638 = vpop.f32.mrb[0].mxu0
    %v639 = vadd.f32 %v542, %v638
    %v640 = vpop.f32.mrb[0].mxu0
    %641 = vmatprep.mubr.bf16.mxu0 %v470
    %642 = vmatmul.mubr.bf16.gmra.mrb[0].mxu0 %v228
    %v643 = vpop.f32.mrb[0].mxu0
    %v644 = vadd.f32 %v547, %v643
    %v645 = vpop.f32.mrb[0].mxu0
    %v646 = vpop.f32.mrb[0].mxu0
    %v647 = vadd.f32 %v550, %v646
    %v648 = vpop.f32.mrb[0].mxu0
    %649 = vmatprep.mubr.bf16.mxu0 %v473
    %650 = vmatmul.mubr.bf16.gmra.mrb[0].mxu0 %v232
    %v651 = vpop.f32.mrb[0].mxu0
    %v652 = vadd.f32 %v555, %v651
    %v653 = vpop.f32.mrb[0].mxu0
    %v654 = vpop.f32.mrb[0].mxu0
    %v655 = vadd.f32 %v558, %v654
    %v656 = vpop.f32.mrb[0].mxu0
    %657 = vmatprep.mubr.bf16.mxu0 %v476
    %658 = vmatmul.mubr.bf16.gmra.mrb[0].mxu0 %v236
    %v659 = vpop.f32.mrb[0].mxu0
    %v660 = vadd.f32 %v563, %v659
    %v661 = vpop.f32.mrb[0].mxu0
    %v662 = vpop.f32.mrb[0].mxu0
    %v663 = vadd.f32 %v566, %v662
    %v664 = vpop.f32.mrb[0].mxu0
    %665 = vmatprep.mubr.bf16.mxu0 %v479
    %666 = vmatmul.mubr.bf16.gmra.mrb[0].mxu0 %v240
    %v667 = vpop.f32.mrb[0].mxu0
    %v668 = vadd.f32 %v571, %v667
    %v669 = vpop.f32.mrb[0].mxu0
    %v670 = vpop.f32.mrb[0].mxu0
    %v671 = vadd.f32 %v574, %v670
    %v672 = vpop.f32.mrb[0].mxu0
    %673 = vmatprep.mubr.bf16.mxu0 %v482
    %674 = vmatmul.mubr.bf16.gmra.mrb[0].mxu0 %v244
    %v675 = vpop.f32.mrb[0].mxu0
    %v676 = vadd.f32 %v579, %v675
    %v677 = vpop.f32.mrb[0].mxu0
    %v678 = vpop.f32.mrb[0].mxu0
    %v679 = vadd.f32 %v582, %v678
    %v680 = vpop.f32.mrb[0].mxu0
    %681 = vdwg.mxu0
    %v682 = vmax.f32 %v620, 0.0
    %v683 = vmax.f32 %v623, 0.0
    %v684 = vmax.f32 %v628, 0.0
    %v685 = vmax.f32 %v631, 0.0
    %v686 = vmax.f32 %v636, 0.0
    %v687 = vmax.f32 %v639, 0.0
    %v688 = vmax.f32 %v644, 0.0
    %v689 = vmax.f32 %v647, 0.0
    %v690 = vmax.f32 %v652, 0.0
    %v691 = vmax.f32 %v655, 0.0
    %v692 = vmax.f32 %v660, 0.0
    %v693 = vmax.f32 %v663, 0.0
    %v694 = vmax.f32 %v668, 0.0
    %v695 = vmax.f32 %v671, 0.0
    %v696 = vmax.f32 %v676, 0.0
    %v697 = vmax.f32 %v679, 0.0
    %698 = vst [vmem:[#allocation2] sm:$0xff] %v682
    %699 = vst [vmem:[#allocation2 + $0x8] sm:$0xff] %v683
    %700 = vst [vmem:[#allocation2 + $0x10] sm:$0xff] %v684
    %701 = vst [vmem:[#allocation2 + $0x18] sm:$0xff] %v685
    %702 = vst [vmem:[#allocation2 + $0x20] sm:$0xff] %v686
    %703 = vst [vmem:[#allocation2 + $0x28] sm:$0xff] %v687
    %704 = vst [vmem:[#allocation2 + $0x30] sm:$0xff] %v688
    %705 = vst [vmem:[#allocation2 + $0x38] sm:$0xff] %v689
    %706 = vst [vmem:[#allocation2 + $0x40] sm:$0xff] %v690
    %707 = vst [vmem:[#allocation2 + $0x48] sm:$0xff] %v691
    %708 = vst [vmem:[#allocation2 + $0x50] sm:$0xff] %v692
    %709 = vst [vmem:[#allocation2 + $0x58] sm:$0xff] %v693
    %710 = vst [vmem:[#allocation2 + $0x60] sm:$0xff] %v694
    %711 = vst [vmem:[#allocation2 + $0x68] sm:$0xff] %v695
    %712 = vst [vmem:[#allocation2 + $0x70] sm:$0xff] %v696
    %713 = vst [vmem:[#allocation2 + $0x78] sm:$0xff] %v697
    // Predicated region
    $region14: #{sequential_forward.3} parent=1 // pred_check
      _
    $region15: #{sequential_forward.3} parent=1 // pred_check_branch
      %715 = sbr.rel (0) target = $region17
    $region16: #{sequential_forward.3} parent=1 // pred_region
      %s717 = ssub.s32 2048, 2048
      %718 = vsyncadd [#allocation3], %s717
      %s719 = sshll.u32 [#allocation2], 4
      %s720 = int_to_ptr.vmem [resolvable:$true] %s719
      %725 = dma.vmem_to_hbm [thread:$0]  %s720, 2048, %s3, [#allocation3], 128, 128, 8
    $region17: #{sequential_forward.3} parent=1 // pred_fallthru
      _
    // Predicated region
    $region18: #{sequential_forward.3} parent=1 // pred_check
      _
    $region19: #{sequential_forward.3} parent=1 // pred_check_branch
      %727 = sbr.rel (0) target = $region21
    $region20: #{sequential_forward.3} parent=1 // pred_region
      %728 = dma.done [#allocation3], 2048
    $region21: #{sequential_forward.3} parent=1 // pred_fallthru
      _
    %729 = vsyncpa [#allocation3], 1

</llo_original>
